<compile_context>
chip_gen: v6e
topology: v6e:2x2x1
jax: 0.10.0
libtpu: 0.0.40
codegen_flags: <defaults>
</compile_context>

<pallas_src>
import functools

import jax
import jax.numpy as jnp
from jax.experimental import pallas as pl
from jax.experimental.pallas import tpu as pltpu


def _round_up(x, m):
    return ((x + m - 1) // m) * m


def hermite_mlp_kernel(x_ref, w1_ref, b1_ref, w2_ref, b2_ref, o_ref):
    """Fused Net forward, hidden-on-sublanes / batch-on-lanes layout.

    In-kernel shapes (already resident in VMEM/SMEM):
      x_ref  : (1, TB)  f32 VMEM   batch block on the lane axis
      w1_ref : (Hp, 1)  f32 VMEM   input_layer weight as a column (hidden on sublanes)
      b1_ref : (Hp, 1)  f32 VMEM   input_layer bias column
      w2_ref : (Hp, 1)  f32 VMEM   output_layer weight column
      b2_ref : (1, 1)   f32 SMEM   output_layer bias (scalar)
      o_ref  : (1, TB)  f32 VMEM   lane-dense output block
    """
    x = x_ref[...]                                    # (1, TB)

    # ---- Layer 1: Linear(1, H) + Sigmoid --------------------------------
    # K == 1, so x @ w1 is an outer product: pure VPU broadcast-multiply.
    h_pre = w1_ref[...] * x + b1_ref[...]             # (Hp, TB)
    # sigmoid(z) = 0.5 * tanh(0.5 * z) + 0.5  -> single EUP op per element.
    h1 = 0.5 * jnp.tanh(0.5 * h_pre) + 0.5            # (Hp, TB)

    # ---- Layer 2: Linear(H, 1), no activation ---------------------------
    # N == 1, so h1 @ w2 is a sublane reduction: VPU multiply + XLU reduce.
    # Padded hidden rows contribute sigmoid(0) * 0 = 0 -> exact.
    y = jnp.sum(h1 * w2_ref[...], axis=0, keepdims=True) + b2_ref[0, 0]   # (1, TB)

    o_ref[...] = y.astype(o_ref.dtype)


def prepare_params(w1, b1, w2, b2):
    """One-time re-layout of the Net parameters for the kernel (hoisted out of
    the per-call hot path).

    Math-form inputs: w1 (1, H), b1 (H,), w2 (H, 1), b2 (1,).
    Returns hidden-on-sublane f32 columns, zero-padded so H is a multiple of 8.
    """
    in_num, hidden = w1.shape
    out_num = w2.shape[1]
    assert in_num == 1 and out_num == 1, (
        "kernel is specialized for the Hermite config (in_num=1, out_num=1)")
    hp = _round_up(hidden, 8)
    w1c = jnp.zeros((hp, 1), jnp.float32).at[:hidden, 0].set(
        w1.reshape(hidden).astype(jnp.float32))
    b1c = jnp.zeros((hp, 1), jnp.float32).at[:hidden, 0].set(
        b1.reshape(hidden).astype(jnp.float32))
    w2c = jnp.zeros((hp, 1), jnp.float32).at[:hidden, 0].set(
        w2.reshape(hidden).astype(jnp.float32))
    b2s = b2.reshape(1, 1).astype(jnp.float32)
    return w1c, b1c, w2c, b2s


@functools.partial(jax.jit, static_argnames=("batch_block",))
def net_forward(x, w1c, b1c, w2c, b2s, batch_block=512):
    """Forward pass of Net: sigmoid(x @ w1 + b1) @ w2 + b2.

    x: (batch, 1).  Parameters must already be in kernel layout (prepare_params).
    """
    batch, in_num = x.shape
    assert in_num == 1, "kernel is specialized for in_num == 1"
    hp = w1c.shape[0]
    orig_dtype = x.dtype

    # Lane block size: multiple of 128; small batches use one 128-lane block.
    tb = batch_block if batch >= batch_block else _round_up(batch, 128)
    bp = _round_up(batch, tb)

    # Lane-dense input: contiguous reshape + zero-pad of the batch axis.
    x_row = jnp.zeros((1, bp), jnpp := jnp.float32).at[0, :batch].set(
        x.reshape(batch).astype(jnp.float32))

    cost = pl.CostEstimate(
        flops=4 * bp * hp,            # layer-1 mul+add, layer-2 mul+reduce
        transcendentals=bp * hp,      # one tanh per hidden activation
        bytes_accessed=4 * (2 * bp + 3 * hp + 1),
    )

    out = pl.pallas_call(
        hermite_mlp_kernel,
        out_shape=jax.ShapeDtypeStruct((1, bp), jnp.float32),
        grid=(bp // tb,),
        in_specs=[
            pl.BlockSpec((1, tb), lambda i: (0, i)),       # x block (lanes)
            pl.BlockSpec((hp, 1), lambda i: (0, 0)),       # w1 column (resident)
            pl.BlockSpec((hp, 1), lambda i: (0, 0)),       # b1 column (resident)
            pl.BlockSpec((hp, 1), lambda i: (0, 0)),       # w2 column (resident)
            pl.BlockSpec(memory_space=pltpu.MemorySpace.SMEM),   # b2 scalar
        ],
        out_specs=pl.BlockSpec((1, tb), lambda i: (0, i)),
        compiler_params=pltpu.CompilerParams(
            dimension_semantics=("parallel",)),            # megacore split on v7x
        cost_estimate=cost,
    )(x_row, w1c, b1c, w2c, b2s)

    return out[0, :batch].reshape(batch, 1).astype(orig_dtype)


def init_params(key, in_num, hidden_num, out_num):
    # Deterministic init mimicking PyTorch's default Linear init:
    # U(-1/sqrt(fan_in), 1/sqrt(fan_in)).  Math-form weights (transposed vs torch).
    k1, k2, k3, k4 = jax.random.split(key, 4)
    bound1 = 1.0 / (in_num ** 0.5)
    bound2 = 1.0 / (hidden_num ** 0.5)
    w1 = jax.random.uniform(k1, (in_num, hidden_num), jnp.float32, -bound1, bound1)
    b1 = jax.random.uniform(k2, (hidden_num,), jnp.float32, -bound1, bound1)
    w2 = jax.random.uniform(k3, (hidden_num, out_num), jnp.float32, -bound2, bound2)
    b2 = jax.random.uniform(k4, (out_num,), jnp.float32, -bound2, bound2)
    return w1, b1, w2, b2


if __name__ == "__main__":
    # Hermite-fitting sizes: scalar input/output, modest hidden width.
    batch, in_num, hidden_num, out_num = 8, 1, 32, 1

    key = jax.random.PRNGKey(0)
    kx, kp = jax.random.split(key)
    x = jax.random.normal(kx, (batch, in_num), dtype=jnp.float32)
    w1, b1, w2, b2 = init_params(kp, in_num, hidden_num, out_num)

    # One-time parameter re-layout (hoisted out of the per-call path).
    w1c, b1c, w2c, b2s = prepare_params(w1, b1, w2, b2)

    y = net_forward(x, w1c, b1c, w2c, b2s)
    y = jax.block_until_ready(y)

    # Pure-JAX reference check (tanh-form sigmoid is mathematically exact;
    # small tolerance covers the EUP tanh approximation).
    h1_ref = jax.nn.sigmoid(x @ w1 + b1)
    y_ref = h1_ref @ w2 + b2
    assert jnp.allclose(y, y_ref, atol=1e-4, rtol=1e-4), "mismatch vs reference"

    print("KERNEL_OK")
</pallas_src>

<mosaic_0001>
module attributes {stable_mosaic.version = 11 : i64} {
  func.func @hermite_mlp_kernel(%arg0: i32, %arg1: memref<1x128xf32, #tpu.memory_space<vmem>>, %arg2: memref<32x1xf32, #tpu.memory_space<vmem>>, %arg3: memref<32x1xf32, #tpu.memory_space<vmem>>, %arg4: memref<32x1xf32, #tpu.memory_space<vmem>>, %arg5: memref<1x1xf32, #tpu.memory_space<smem>>, %arg6: memref<1x128xf32, #tpu.memory_space<vmem>>) attributes {dimension_semantics = [#tpu.dimension_semantics<parallel>], iteration_bounds = array<i64: 1>, scalar_prefetch = 0 : i64, scratch_operands = 0 : i64, tpu.core_type = #tpu.core_type<tc>, window_params = [{transform_indices = @transform_0, window_bounds = array<i64: 1, 128>}, {pipeline_mode = #tpu.pipeline_mode<synchronous>, transform_indices = @transform_1, window_bounds = array<i64: 32, 1>}, {pipeline_mode = #tpu.pipeline_mode<synchronous>, transform_indices = @transform_2, window_bounds = array<i64: 32, 1>}, {pipeline_mode = #tpu.pipeline_mode<synchronous>, transform_indices = @transform_3, window_bounds = array<i64: 32, 1>}, {transform_indices = @transform_4, window_bounds = array<i64: 1, 1>}, {transform_indices = @transform_5, window_bounds = array<i64: 1, 128>}]} {
    %c0 = arith.constant 0 : index
    %c0_0 = arith.constant 0 : index
    %0 = vector.load %arg1[%c0, %c0_0] : memref<1x128xf32, #tpu.memory_space<vmem>>, vector<1x128xf32>
    %c0_1 = arith.constant 0 : index
    %c0_2 = arith.constant 0 : index
    %1 = vector.load %arg2[%c0_1, %c0_2] : memref<32x1xf32, #tpu.memory_space<vmem>>, vector<32x1xf32>
    %2 = vector.broadcast %1 : vector<32x1xf32> to vector<32x128xf32>
    %3 = vector.broadcast %0 : vector<1x128xf32> to vector<32x128xf32>
    %4 = arith.mulf %2, %3 : vector<32x128xf32>
    %c0_3 = arith.constant 0 : index
    %c0_4 = arith.constant 0 : index
    %5 = vector.load %arg3[%c0_3, %c0_4] : memref<32x1xf32, #tpu.memory_space<vmem>>, vector<32x1xf32>
    %6 = vector.broadcast %5 : vector<32x1xf32> to vector<32x128xf32>
    %7 = arith.addf %4, %6 : vector<32x128xf32>
    %cst = arith.constant 5.000000e-01 : f32
    %8 = vector.broadcast %cst : f32 to vector<32x128xf32>
    %9 = arith.mulf %8, %7 : vector<32x128xf32>
    %10 = math.tanh %9 : vector<32x128xf32>
    %cst_5 = arith.constant 5.000000e-01 : f32
    %11 = vector.broadcast %cst_5 : f32 to vector<32x128xf32>
    %12 = arith.mulf %11, %10 : vector<32x128xf32>
    %cst_6 = arith.constant 5.000000e-01 : f32
    %13 = vector.broadcast %cst_6 : f32 to vector<32x128xf32>
    %14 = arith.addf %12, %13 : vector<32x128xf32>
    %c0_7 = arith.constant 0 : index
    %c0_8 = arith.constant 0 : index
    %15 = vector.load %arg4[%c0_7, %c0_8] : memref<32x1xf32, #tpu.memory_space<vmem>>, vector<32x1xf32>
    %16 = vector.broadcast %15 : vector<32x1xf32> to vector<32x128xf32>
    %17 = arith.mulf %14, %16 : vector<32x128xf32>
    %cst_9 = arith.constant dense<0.000000e+00> : vector<128xf32>
    %18 = vector.multi_reduction <add>, %17, %cst_9 [0] : vector<32x128xf32> to vector<128xf32>
    %19 = vector.shape_cast %18 : vector<128xf32> to vector<1x128xf32>
    %c0_10 = arith.constant 0 : index
    %c0_11 = arith.constant 0 : index
    %20 = memref.load %arg5[%c0_10, %c0_11] : memref<1x1xf32, #tpu.memory_space<smem>>
    %21 = vector.broadcast %20 : f32 to vector<1x128xf32>
    %22 = arith.addf %19, %21 : vector<1x128xf32>
    %c0_12 = arith.constant 0 : index
    %c0_13 = arith.constant 0 : index
    %23 = vector.load %arg6[%c0_12, %c0_13] : memref<1x128xf32, #tpu.memory_space<vmem>>, vector<1x128xf32>
    tpu.vector_store %arg6[%c0_12, %c0_13], %22 {strides = array<i32>} : memref<1x128xf32, #tpu.memory_space<vmem>>, vector<1x128xf32>,
    return
  }
  func.func @transform_0(%arg0: i32) -> (i32, i32) {
    %c0_i32 = arith.constant 0 : i32
    %c0_i32_0 = arith.constant 0 : i32
    return %c0_i32, %arg0 : i32, i32
  }
  func.func @transform_1(%arg0: i32) -> (i32, i32) {
    %c0_i32 = arith.constant 0 : i32
    %c0_i32_0 = arith.constant 0 : i32
    %c0_i32_1 = arith.constant 0 : i32
    return %c0_i32, %c0_i32_0 : i32, i32
  }
  func.func @transform_2(%arg0: i32) -> (i32, i32) {
    %c0_i32 = arith.constant 0 : i32
    %c0_i32_0 = arith.constant 0 : i32
    %c0_i32_1 = arith.constant 0 : i32
    return %c0_i32, %c0_i32_0 : i32, i32
  }
  func.func @transform_3(%arg0: i32) -> (i32, i32) {
    %c0_i32 = arith.constant 0 : i32
    %c0_i32_0 = arith.constant 0 : i32
    %c0_i32_1 = arith.constant 0 : i32
    return %c0_i32, %c0_i32_0 : i32, i32
  }
  func.func @transform_4(%arg0: i32) -> (i32, i32) {
    %c0_i32 = arith.constant 0 : i32
    %c0_i32_0 = arith.constant 0 : i32
    %c0_i32_1 = arith.constant 0 : i32
    return %c0_i32, %c0_i32_0 : i32, i32
  }
  func.func @transform_5(%arg0: i32) -> (i32, i32) {
    %c0_i32 = arith.constant 0 : i32
    %c0_i32_0 = arith.constant 0 : i32
    return %c0_i32, %arg0 : i32, i32
  }
}

</mosaic_0001>

<llo_original>
// kernel: net_forward.1
$region0: #{net_forward.1}
  #allocation0 [shape = 'u32[]', space=smem, size = 0x4, offset = 0x4, fixed_abs, tag = 'smem constant byte address 0x4 - core index']
  #allocation1 [shape = 'u32[144,128]{1,0:T(1,128)}', space=vmem, size = 0x12000, scoped, tag = 'internal scratch']
  #allocation2 [shape = 'f32[1,1]{1,0:T(1,128)S(6)}', space=smem, size = 0x200, scoped, tag = 'scoped memory for net_forward.1']
  %s0 = inlined_call_operand.vmem [shape: f32[1,128], index: 0, kind: input, shape index: {}]
  %s1 = inlined_call_operand.vmem [shape: f32[32,1], index: 1, kind: input, shape index: {}]
  %s2 = inlined_call_operand.vmem [shape: f32[32,1], index: 2, kind: input, shape index: {}]
  %s3 = inlined_call_operand.vmem [shape: f32[32,1], index: 3, kind: input, shape index: {}]
  %s4 = inlined_call_operand.<no memory space> [shape: f32[1,1], index: 4, kind: input, shape index: {}]
  %s5 = inlined_call_operand.vmem [shape: f32[1,128], index: 5, kind: output, shape index: {}]
  %s6 = sld [smem:[#allocation0]]
  $region30: #{net_forward.1} parent=0
    _
  %s8 = ssub.s32 1, %s6
  %s9 = scalar_select 0, %s8, %s6
  %10 = sst [smem:[#allocation2]] %s4
  // Predicated region
  $region2: #{net_forward.1} parent=0 // pred_check
    _
  $region3: #{net_forward.1} parent=0 // pred_check_branch
    %12 = sbr.rel (0) target = $region5
  $region4: #{net_forward.1} parent=0 // pred_region
    _
  $region5: #{net_forward.1} parent=0 // pred_fallthru
    _
  // Predicated region
  $region6: #{net_forward.1} parent=0 // pred_check
    _
  $region7: #{net_forward.1} parent=0 // pred_check_branch
    %14 = sbr.rel (0) target = $region9
  $region8: #{net_forward.1} parent=0 // pred_region
    _
  $region9: #{net_forward.1} parent=0 // pred_fallthru
    _
  // Predicated region
  $region10: #{net_forward.1} parent=0 // pred_check
    _
  $region11: #{net_forward.1} parent=0 // pred_check_branch
    %16 = sbr.rel (0) target = $region13
  $region12: #{net_forward.1} parent=0 // pred_region
    _
  $region13: #{net_forward.1} parent=0 // pred_fallthru
    _
  // Predicated region
  $region14: #{net_forward.1} parent=0 // pred_check
    _
  $region15: #{net_forward.1} parent=0 // pred_check_branch
    %18 = sbr.rel (0) target = $region17
  $region16: #{net_forward.1} parent=0 // pred_region
    _
  $region17: #{net_forward.1} parent=0 // pred_fallthru
    _
  // Predicated region
  $region18: #{net_forward.1} parent=0 // pred_check
    _
  $region19: #{net_forward.1} parent=0 // pred_check_branch
    %20 = sbr.rel (0) target = $region21
  $region20: #{net_forward.1} parent=0 // pred_region
    _
  $region21: #{net_forward.1} parent=0 // pred_fallthru
    _
  %v21 = vld [vmem:[%s0] sm:$0x1]
  %v22 = vld [vmem:[%s1] sm:$0xff]
  %v23 = vld [vmem:[%s1 + $0x8] sm:$0xff]
  %v24 = vld [vmem:[%s1 + $0x10] sm:$0xff]
  %v25 = vld [vmem:[%s1 + $0x18] sm:$0xff]
  %27 = vset.pattern.permute.xlu0 0
  %28 = vperm.xlu0 %27, %v22
  %v29 = vpop.permute.xlu0 %28
  %32 = vset.pattern.permute.xlu0 0
  %33 = vperm.xlu0 %32, %v23
  %v34 = vpop.permute.xlu0 %33
  %37 = vset.pattern.permute.xlu0 0
  %38 = vperm.xlu0 %37, %v24
  %v39 = vpop.permute.xlu0 %38
  %42 = vset.pattern.permute.xlu0 0
  %43 = vperm.xlu0 %42, %v25
  %v44 = vpop.permute.xlu0 %43
  %v47 = vlaneseq
  %v48 = vshrl.u32 %v47, 7
  %v49 = vsub.s32 0, %v48
  %v50 = vrot.slane %v21, %v49
  %v52 = vmul.f32 %v29, %v50
  %v53 = vmul.f32 %v34, %v50
  %v54 = vmul.f32 %v39, %v50
  %v55 = vmul.f32 %v44, %v50
  %v56 = vld [vmem:[%s2] sm:$0xff]
  %v57 = vld [vmem:[%s2 + $0x8] sm:$0xff]
  %v58 = vld [vmem:[%s2 + $0x10] sm:$0xff]
  %v59 = vld [vmem:[%s2 + $0x18] sm:$0xff]
  %61 = vset.pattern.permute.xlu0 0
  %62 = vperm.xlu0 %61, %v56
  %v63 = vpop.permute.xlu0 %62
  %66 = vset.pattern.permute.xlu0 0
  %67 = vperm.xlu0 %66, %v57
  %v68 = vpop.permute.xlu0 %67
  %71 = vset.pattern.permute.xlu0 0
  %72 = vperm.xlu0 %71, %v58
  %v73 = vpop.permute.xlu0 %72
  %76 = vset.pattern.permute.xlu0 0
  %77 = vperm.xlu0 %76, %v59
  %v78 = vpop.permute.xlu0 %77
  %v80 = vadd.f32 %v52, %v63
  %v81 = vadd.f32 %v53, %v68
  %v82 = vadd.f32 %v54, %v73
  %v83 = vadd.f32 %v55, %v78
  %v84 = vmul.f32 %v80, 0.5
  %v85 = vmul.f32 %v81, 0.5
  %v86 = vmul.f32 %v82, 0.5
  %v87 = vmul.f32 %v83, 0.5
  %v88 = vtanh.pop %v84
  %v89 = vtanh.pop %v85
  %v90 = vtanh.pop %v86
  %v91 = vtanh.pop %v87
  %v92 = vmul.f32 %v88, 0.5
  %v93 = vmul.f32 %v89, 0.5
  %v94 = vmul.f32 %v90, 0.5
  %v95 = vmul.f32 %v91, 0.5
  %v96 = vadd.f32 %v92, 0.5
  %v97 = vadd.f32 %v93, 0.5
  %v98 = vadd.f32 %v94, 0.5
  %v99 = vadd.f32 %v95, 0.5
  %v100 = vld [vmem:[%s3] sm:$0xff]
  %v101 = vld [vmem:[%s3 + $0x8] sm:$0xff]
  %v102 = vld [vmem:[%s3 + $0x10] sm:$0xff]
  %v103 = vld [vmem:[%s3 + $0x18] sm:$0xff]
  %105 = vset.pattern.permute.xlu0 0
  %106 = vperm.xlu0 %105, %v100
  %v107 = vpop.permute.xlu0 %106
  %110 = vset.pattern.permute.xlu0 0
  %111 = vperm.xlu0 %110, %v101
  %v112 = vpop.permute.xlu0 %111
  %115 = vset.pattern.permute.xlu0 0
  %116 = vperm.xlu0 %115, %v102
  %v117 = vpop.permute.xlu0 %116
  %120 = vset.pattern.permute.xlu0 0
  %121 = vperm.xlu0 %120, %v103
  %v122 = vpop.permute.xlu0 %121
  %v124 = vmul.f32 %v96, %v107
  %v125 = vmul.f32 %v97, %v112
  %v126 = vmul.f32 %v98, %v117
  %v127 = vmul.f32 %v99, %v122
  %v128 = vadd.f32 %v124, %v125
  %v129 = vadd.f32 %v128, %v126
  %v130 = vadd.f32 %v129, %v127
  %v131 = vrot.slane %v130, 4
  %v132 = vadd.f32 %v130, %v131
  %v133 = vrot.slane %v132, 2
  %v134 = vadd.f32 %v132, %v133
  %v135 = vrot.slane %v134, 1
  %v136 = vadd.f32 %v134, %v135
  %s137 = sld [smem:[#allocation2]]
  %v138 = vstv %s137
  %v139 = vadd.f32 %v136, %v138
  %140 = vst [vmem:[%s5] sm:$0x1] %v139
  // Predicated region
  $region22: #{net_forward.1} parent=0 // pred_check
    _
  $region23: #{net_forward.1} parent=0 // pred_check_branch
    %142 = sbr.rel (0) target = $region25
  $region24: #{net_forward.1} parent=0 // pred_region
    _
  $region25: #{net_forward.1} parent=0 // pred_fallthru
    _
  // Predicated region
  $region26: #{net_forward.1} parent=0 // pred_check
    _
  $region27: #{net_forward.1} parent=0 // pred_check_branch
    %144 = sbr.rel (0) target = $region29
  $region28: #{net_forward.1} parent=0 // pred_region
    _
  $region29: #{net_forward.1} parent=0 // pred_fallthru
    _

</llo_original>
